<compile_context>
chip_gen: v7x
topology: tpu7x:2x2x1
jax: 0.10.0
libtpu: 0.0.40
codegen_flags: <defaults>
</compile_context>

<pallas_src>
import jax
import jax.numpy as jnp
from jax import lax
from jax.experimental import pallas as pl
from jax.experimental.pallas import tpu as pltpu


def _round_up(x, m):
    return (x + m - 1) // m * m


def _make_kernel(odim, std, std_start, std_max):
    """Kernel body; closes over scalar hyperparameters."""

    def kernel(x_ref, w1_ref, b1_ref, wh_ref, bh_ref, out_ref):
        x = x_ref[...]                                         # (bB, idim)
        # hidden = relu(x @ W1 + b1)
        h = jnp.dot(x, w1_ref[...],
                    preferred_element_type=jnp.float32) + b1_ref[...]
        h = jnp.maximum(h, 0.0)
        # single fused head matmul -> packed (bB, P) slab
        packed = jnp.dot(h, wh_ref[...],
                         preferred_element_type=jnp.float32) + bh_ref[...]
        if std is not None:
            # Constant-std path: wrapper built wh/bh so that std columns are
            # exactly the constant (zero weights, bias = std).  NOTE: this
            # intentionally skips the dead third matmul of the PyTorch code
            # (`lin3(h)*0 + std`), which only differs by propagating NaN/Inf.
            out = packed
        else:
            bB, P = packed.shape
            col = lax.broadcasted_iota(jnp.int32, (bB, P), 1)
            is_std = jnp.logical_and(col >= odim, col < 2 * odim)
            std_vals = (jax.nn.sigmoid(packed + jnp.float32(std_start))
                        + jnp.float32(1e-8)) * jnp.float32(std_max)
            out = jnp.where(is_std, std_vals, packed)
        out_ref[...] = out.astype(out_ref.dtype)

    return kernel


def gaussian_policy_forward(x, params, *, std=None, std_start=0.2,
                            std_max=0.4, block_b=None):
    """Pallas forward. x: (B, idim) f32. Returns (m, std), each (B, odim)."""
    w1, b1, w2, b2, w3, b3 = params
    B, idim = x.shape
    h1dim = w1.shape[1]
    odim = w2.shape[1]

    # ---- fuse / pad the head into a single lane-dense (h1dim, P) matmul ----
    P = max(128, _round_up(2 * odim, 128))
    wh = jnp.zeros((h1dim, P), jnp.float32)
    bh = jnp.zeros((1, P), jnp.float32)
    wh = wh.at[:, :odim].set(w2)
    bh = bh.at[:, :odim].set(b2)
    if std is not None:
        # std columns: zero weights + constant bias -> constant std output.
        bh = bh.at[:, odim:2 * odim].set(jnp.float32(std))
    else:
        wh = wh.at[:, odim:2 * odim].set(w3)
        bh = bh.at[:, odim:2 * odim].set(b3)

    # ---- batch tiling (parallel grid; pads B up to a sublane multiple) ----
    if block_b is None:
        block_b = min(_round_up(B, 8), 256)
    B_pad = _round_up(B, block_b)
    if B_pad != B:
        x = jnp.pad(x, ((0, B_pad - B), (0, 0)))
    grid = (B_pad // block_b,)

    kernel = _make_kernel(odim, std, std_start, std_max)

    packed = pl.pallas_call(
        kernel,
        out_shape=jax.ShapeDtypeStruct((B_pad, P), jnp.float32),
        grid_spec=pltpu.PrefetchScalarGridSpec(
            num_scalar_prefetch=0,
            grid=grid,
            in_specs=[
                pl.BlockSpec((block_b, idim), lambda i: (i, 0)),   # x
                pl.BlockSpec((idim, h1dim), lambda i: (0, 0)),     # W1
                pl.BlockSpec((1, h1dim), lambda i: (0, 0)),        # b1
                pl.BlockSpec((h1dim, P), lambda i: (0, 0)),        # fused head W
                pl.BlockSpec((1, P), lambda i: (0, 0)),            # fused head b
            ],
            out_specs=pl.BlockSpec((block_b, P), lambda i: (i, 0)),
        ),
        compiler_params=pltpu.CompilerParams(
            dimension_semantics=("parallel",)),
    )(x, w1, b1, wh, bh)

    m = packed[:B, :odim]
    std_out = packed[:B, odim:2 * odim]
    return m, std_out


def init_params(key, idim, h1dim, odim):
    """Deterministic init mimicking nn.Linear's uniform(-1/sqrt(fan_in), ...).

    Weights stored as (in_features, out_features) so the kernel does x @ W.
    """
    ks = jax.random.split(key, 6)

    def lin(kw, kb, fan_in, fan_out):
        bound = 1.0 / jnp.sqrt(jnp.float32(fan_in))
        w = jax.random.uniform(kw, (fan_in, fan_out), jnp.float32, -bound, bound)
        b = jax.random.uniform(kb, (1, fan_out), jnp.float32, -bound, bound)
        return w, b

    w1, b1 = lin(ks[0], ks[1], idim, h1dim)
    w2, b2 = lin(ks[2], ks[3], h1dim, odim)
    w3, b3 = lin(ks[4], ks[5], h1dim, odim)
    return (w1, b1, w2, b2, w3, b3)


def reference_forward(x, params, *, std=None, std_start=0.2, std_max=0.4):
    """Pure-JAX reference mirroring the PyTorch forward."""
    w1, b1, w2, b2, w3, b3 = params
    h = jnp.maximum(x @ w1 + b1, 0.0)
    m = h @ w2 + b2
    if std is not None:
        out_std = (h @ w3 + b3 + std_start) * 0.0 + std
    else:
        out_std = (jax.nn.sigmoid(h @ w3 + b3 + std_start) + 1e-8) * std_max
    return m, out_std


if __name__ == "__main__":
    B, idim, h1dim, odim = 8, 16, 32, 8
    std_start, std_max = 0.2, 0.4

    key = jax.random.PRNGKey(0)
    kx, kp = jax.random.split(key)
    x = jax.random.normal(kx, (B, idim), jnp.float32)
    params = init_params(kp, idim, h1dim, odim)

    # Learned-std path.
    m, s = gaussian_policy_forward(x, params, std=None,
                                   std_start=std_start, std_max=std_max)
    jax.block_until_ready((m, s))
    m_ref, s_ref = reference_forward(x, params, std=None,
                                     std_start=std_start, std_max=std_max)
    assert m.shape == (B, odim) and s.shape == (B, odim)
    assert jnp.allclose(m, m_ref, atol=1e-5, rtol=1e-5)
    assert jnp.allclose(s, s_ref, atol=1e-5, rtol=1e-5)

    # Constant-std path (third matmul skipped entirely in the kernel).
    m2, s2 = gaussian_policy_forward(x, params, std=0.3,
                                     std_start=std_start, std_max=std_max)
    jax.block_until_ready((m2, s2))
    m2_ref, s2_ref = reference_forward(x, params, std=0.3,
                                       std_start=std_start, std_max=std_max)
    assert jnp.allclose(m2, m2_ref, atol=1e-5, rtol=1e-5)
    assert jnp.allclose(s2, s2_ref, atol=1e-5, rtol=1e-5)

    print("KERNEL_OK")
</pallas_src>

<mosaic_0001>
module attributes {stable_mosaic.version = 11 : i64} {
  func.func @kernel(%arg0: i32, %arg1: memref<8x16xf32, #tpu.memory_space<vmem>>, %arg2: memref<16x32xf32, #tpu.memory_space<vmem>>, %arg3: memref<1x32xf32, #tpu.memory_space<vmem>>, %arg4: memref<32x128xf32, #tpu.memory_space<vmem>>, %arg5: memref<1x128xf32, #tpu.memory_space<vmem>>, %arg6: memref<8x128xf32, #tpu.memory_space<vmem>>) attributes {dimension_semantics = [#tpu.dimension_semantics<parallel>], iteration_bounds = array<i64: 1>, scalar_prefetch = 0 : i64, scratch_operands = 0 : i64, tpu.core_type = #tpu.core_type<tc>, window_params = [{transform_indices = @transform_0, window_bounds = array<i64: 8, 16>}, {pipeline_mode = #tpu.pipeline_mode<synchronous>, transform_indices = @transform_1, window_bounds = array<i64: 16, 32>}, {pipeline_mode = #tpu.pipeline_mode<synchronous>, transform_indices = @transform_2, window_bounds = array<i64: 1, 32>}, {pipeline_mode = #tpu.pipeline_mode<synchronous>, transform_indices = @transform_3, window_bounds = array<i64: 32, 128>}, {pipeline_mode = #tpu.pipeline_mode<synchronous>, transform_indices = @transform_4, window_bounds = array<i64: 1, 128>}, {transform_indices = @transform_5, window_bounds = array<i64: 8, 128>}]} {
    %c0 = arith.constant 0 : index
    %c0_0 = arith.constant 0 : index
    %0 = vector.load %arg1[%c0, %c0_0] : memref<8x16xf32, #tpu.memory_space<vmem>>, vector<8x16xf32>
    %c0_1 = arith.constant 0 : index
    %c0_2 = arith.constant 0 : index
    %1 = vector.load %arg2[%c0_1, %c0_2] : memref<16x32xf32, #tpu.memory_space<vmem>>, vector<16x32xf32>
    %cst = arith.constant dense<0.000000e+00> : vector<8x32xf32>
    %2 = tpu.matmul %0, %1, %cst {dimension_numbers = #tpu.dot_dimension_numbers<[1], [0], [0], [1], [0, 0, 1, 1], [], []>} : vector<8x16xf32>, vector<16x32xf32>, vector<8x32xf32> -> vector<8x32xf32>
    %c0_3 = arith.constant 0 : index
    %c0_4 = arith.constant 0 : index
    %3 = vector.load %arg3[%c0_3, %c0_4] : memref<1x32xf32, #tpu.memory_space<vmem>>, vector<1x32xf32>
    %4 = vector.broadcast %3 : vector<1x32xf32> to vector<8x32xf32>
    %5 = arith.addf %2, %4 : vector<8x32xf32>
    %cst_5 = arith.constant 0.000000e+00 : f32
    %6 = vector.broadcast %cst_5 : f32 to vector<8x32xf32>
    %7 = arith.maximumf %5, %6 : vector<8x32xf32>
    %c0_6 = arith.constant 0 : index
    %c0_7 = arith.constant 0 : index
    %8 = vector.load %arg4[%c0_6, %c0_7] : memref<32x128xf32, #tpu.memory_space<vmem>>, vector<32x128xf32>
    %cst_8 = arith.constant dense<0.000000e+00> : vector<8x128xf32>
    %9 = tpu.matmul %7, %8, %cst_8 {dimension_numbers = #tpu.dot_dimension_numbers<[1], [0], [0], [1], [0, 0, 1, 1], [], []>} : vector<8x32xf32>, vector<32x128xf32>, vector<8x128xf32> -> vector<8x128xf32>
    %c0_9 = arith.constant 0 : index
    %c0_10 = arith.constant 0 : index
    %10 = vector.load %arg5[%c0_9, %c0_10] : memref<1x128xf32, #tpu.memory_space<vmem>>, vector<1x128xf32>
    %11 = vector.broadcast %10 : vector<1x128xf32> to vector<8x128xf32>
    %12 = arith.addf %9, %11 : vector<8x128xf32>
    %13 = tpu.iota {dimensions = array<i32: 1>} : vector<8x128xi32>
    %c8_i32 = arith.constant 8 : i32
    %14 = vector.broadcast %c8_i32 : i32 to vector<8x128xi32>
    %15 = arith.cmpi sge, %13, %14 : vector<8x128xi32>
    %c16_i32 = arith.constant 16 : i32
    %16 = vector.broadcast %c16_i32 : i32 to vector<8x128xi32>
    %17 = arith.cmpi slt, %13, %16 : vector<8x128xi32>
    %18 = arith.andi %15, %17 : vector<8x128xi1>
    %cst_11 = arith.constant 2.000000e-01 : f32
    %19 = vector.broadcast %cst_11 : f32 to vector<8x128xf32>
    %20 = arith.addf %12, %19 : vector<8x128xf32>
    %21 = arith.negf %20 : vector<8x128xf32>
    %22 = math.exp %21 : vector<8x128xf32>
    %cst_12 = arith.constant 1.000000e+00 : f32
    %23 = vector.broadcast %cst_12 : f32 to vector<8x128xf32>
    %24 = arith.addf %23, %22 : vector<8x128xf32>
    %25 = arith.divf %23, %24 : vector<8x128xf32>
    %cst_13 = arith.constant 9.99999993E-9 : f32
    %26 = vector.broadcast %cst_13 : f32 to vector<8x128xf32>
    %27 = arith.addf %25, %26 : vector<8x128xf32>
    %cst_14 = arith.constant 4.000000e-01 : f32
    %28 = vector.broadcast %cst_14 : f32 to vector<8x128xf32>
    %29 = arith.mulf %27, %28 : vector<8x128xf32>
    %30 = arith.select %18, %29, %12 : vector<8x128xi1>, vector<8x128xf32>
    %c0_15 = arith.constant 0 : index
    %c0_16 = arith.constant 0 : index
    %31 = vector.load %arg6[%c0_15, %c0_16] : memref<8x128xf32, #tpu.memory_space<vmem>>, vector<8x128xf32>
    tpu.vector_store %arg6[%c0_15, %c0_16], %30 {strides = array<i32>} : memref<8x128xf32, #tpu.memory_space<vmem>>, vector<8x128xf32>,
    return
  }
  func.func @transform_0(%arg0: i32) -> (i32, i32) {
    %c0_i32 = arith.constant 0 : i32
    %c0_i32_0 = arith.constant 0 : i32
    return %arg0, %c0_i32 : i32, i32
  }
  func.func @transform_1(%arg0: i32) -> (i32, i32) {
    %c0_i32 = arith.constant 0 : i32
    %c0_i32_0 = arith.constant 0 : i32
    %c0_i32_1 = arith.constant 0 : i32
    return %c0_i32, %c0_i32_0 : i32, i32
  }
  func.func @transform_2(%arg0: i32) -> (i32, i32) {
    %c0_i32 = arith.constant 0 : i32
    %c0_i32_0 = arith.constant 0 : i32
    %c0_i32_1 = arith.constant 0 : i32
    return %c0_i32, %c0_i32_0 : i32, i32
  }
  func.func @transform_3(%arg0: i32) -> (i32, i32) {
    %c0_i32 = arith.constant 0 : i32
    %c0_i32_0 = arith.constant 0 : i32
    %c0_i32_1 = arith.constant 0 : i32
    return %c0_i32, %c0_i32_0 : i32, i32
  }
  func.func @transform_4(%arg0: i32) -> (i32, i32) {
    %c0_i32 = arith.constant 0 : i32
    %c0_i32_0 = arith.constant 0 : i32
    %c0_i32_1 = arith.constant 0 : i32
    return %c0_i32, %c0_i32_0 : i32, i32
  }
  func.func @transform_5(%arg0: i32) -> (i32, i32) {
    %c0_i32 = arith.constant 0 : i32
    %c0_i32_0 = arith.constant 0 : i32
    return %arg0, %c0_i32 : i32, i32
  }
}

</mosaic_0001>

<llo_original>
// kernel: tpu_custom_call.1
$region0: #{tpu_custom_call.1}
  #allocation0 [shape = 'u32[]', space=smem, size = 0x4, offset = 0x4, fixed_abs, tag = 'smem constant byte address 0x4 - core index']
  #allocation1 [shape = 'u32[144,128]{1,0:T(1,128)}', space=vmem, size = 0x12000, scoped, tag = 'internal scratch']
  %s0 = inlined_call_operand.hbm [shape: f32[8,16], index: 0, kind: input, shape index: {}]
  %s1 = inlined_call_operand.hbm [shape: f32[16,32], index: 1, kind: input, shape index: {}]
  %s2 = inlined_call_operand.vmem [shape: f32[1,32], index: 2, kind: input, shape index: {}]
  %s3 = inlined_call_operand.hbm [shape: f32[32,128], index: 3, kind: input, shape index: {}]
  %s4 = inlined_call_operand.vmem [shape: f32[1,128], index: 4, kind: input, shape index: {}]
  %s5 = inlined_call_operand.hbm [shape: f32[8,128], index: 5, kind: output, shape index: {}]
  %s6 = sld [smem:[#allocation0]]
  $region42: #{tpu_custom_call.1} parent=0
    _
  %s8 = ssub.s32 1, %s6
  %s9 = scalar_select 0, %s8, %s6
  $region1: #{tpu_custom_call.1} parent=0
    #allocation2 [shape = 'u8[4096]{0}', space=vmem, size = 0x1000, scoped, tag = 'input window, operand 0, single buffered']
    #allocation3 [shape = 's32[1]{0}', space=sflag, size = 0x4, scoped, tag = 'scoped memory for tpu_custom_call.1']
    #allocation4 [shape = 's32[1]{0}', space=sflag, size = 0x4, scoped, tag = 'scoped memory for tpu_custom_call.1']
    #allocation5 [shape = 'u8[8192]{0}', space=vmem, size = 0x2000, scoped, tag = 'input window, operand 1, single buffered']
    #allocation6 [shape = 's32[1]{0}', space=sflag, size = 0x4, scoped, tag = 'scoped memory for tpu_custom_call.1']
    #allocation7 [shape = 'u8[16384]{0}', space=vmem, size = 0x4000, scoped, tag = 'input window, operand 3, single buffered']
    #allocation8 [shape = 'u8[4096]{0}', space=vmem, size = 0x1000, scoped, tag = 'output window, operand 0, single buffered']
    %10 = vsyncpa [#allocation3], 0
    %11 = vsyncpa [#allocation6], 0
    %12 = vsyncpa [#allocation4], 0
    // Predicated region
    $region2: #{tpu_custom_call.1} parent=1 // pred_check
      _
    $region3: #{tpu_custom_call.1} parent=1 // pred_check_branch
      %14 = sbr.rel (0) target = $region5
    $region4: #{tpu_custom_call.1} parent=1 // pred_region
      %s16 = ssub.s32 128, 128
      %17 = vsyncadd [#allocation3], %s16
      %s19 = sshll.u32 [#allocation2], 4
      %s20 = int_to_ptr.vmem [resolvable:$true] %s19
      %22 = dma.hbm_to_vmem [thread:$0]  %s0, 128, %s20, [#allocation3]
    $region5: #{tpu_custom_call.1} parent=1 // pred_fallthru
      _
    // Predicated region
    $region6: #{tpu_custom_call.1} parent=1 // pred_check
      _
    $region7: #{tpu_custom_call.1} parent=1 // pred_check_branch
      %24 = sbr.rel (0) target = $region9
    $region8: #{tpu_custom_call.1} parent=1 // pred_region
      %s26 = ssub.s32 256, 256
      %27 = vsyncadd [#allocation6], %s26
      %s28 = sshll.u32 [#allocation5], 4
      %s29 = int_to_ptr.vmem [resolvable:$true] %s28
      %34 = dma.hbm_to_vmem [thread:$0]  %s1, 256, %s29, [#allocation6], 128, 128, 8
    $region9: #{tpu_custom_call.1} parent=1 // pred_fallthru
      _
    // Predicated region
    $region10: #{tpu_custom_call.1} parent=1 // pred_check
      _
    $region11: #{tpu_custom_call.1} parent=1 // pred_check_branch
      %36 = sbr.rel (0) target = $region13
    $region12: #{tpu_custom_call.1} parent=1 // pred_region
      _
    $region13: #{tpu_custom_call.1} parent=1 // pred_fallthru
      _
    // Predicated region
    $region14: #{tpu_custom_call.1} parent=1 // pred_check
      _
    $region15: #{tpu_custom_call.1} parent=1 // pred_check_branch
      %38 = sbr.rel (0) target = $region17
    $region16: #{tpu_custom_call.1} parent=1 // pred_region
      %s40 = ssub.s32 512, 512
      %41 = vsyncadd [#allocation6], %s40
      %s42 = sshll.u32 [#allocation7], 4
      %s43 = int_to_ptr.vmem [resolvable:$true] %s42
      %48 = dma.hbm_to_vmem [thread:$0]  %s3, 512, %s43, [#allocation6], 128, 128, 8
    $region17: #{tpu_custom_call.1} parent=1 // pred_fallthru
      _
    // Predicated region
    $region18: #{tpu_custom_call.1} parent=1 // pred_check
      _
    $region19: #{tpu_custom_call.1} parent=1 // pred_check_branch
      %50 = sbr.rel (0) target = $region21
    $region20: #{tpu_custom_call.1} parent=1 // pred_region
      _
    $region21: #{tpu_custom_call.1} parent=1 // pred_fallthru
      _
    // Predicated region
    $region22: #{tpu_custom_call.1} parent=1 // pred_check
      _
    $region23: #{tpu_custom_call.1} parent=1 // pred_check_branch
      %52 = sbr.rel (0) target = $region25
    $region24: #{tpu_custom_call.1} parent=1 // pred_region
      %53 = dma.done [#allocation3], 128
    $region25: #{tpu_custom_call.1} parent=1 // pred_fallthru
      _
    // Predicated region
    $region26: #{tpu_custom_call.1} parent=1 // pred_check
      _
    $region27: #{tpu_custom_call.1} parent=1 // pred_check_branch
      %55 = sbr.rel (0) target = $region29
    $region28: #{tpu_custom_call.1} parent=1 // pred_region
      %56 = dma.done [#allocation6], 256
    $region29: #{tpu_custom_call.1} parent=1 // pred_fallthru
      _
    // Predicated region
    $region30: #{tpu_custom_call.1} parent=1 // pred_check
      _
    $region31: #{tpu_custom_call.1} parent=1 // pred_check_branch
      %58 = sbr.rel (0) target = $region33
    $region32: #{tpu_custom_call.1} parent=1 // pred_region
      %59 = dma.done [#allocation6], 512
    $region33: #{tpu_custom_call.1} parent=1 // pred_fallthru
      _
    %v60 = vld [vmem:[#allocation2] sm:$0xff]
    %v61 = vld [vmem:[#allocation5] sm:$0xff]
    %v62 = vld [vmem:[#allocation5 + $0x8] sm:$0xff]
    %v63 = vld [vmem:[%s2] sm:$0x1]
    %v65 = vlaneseq
    %v66 = vshrl.u32 %v65, 7
    %v67 = vsub.s32 0, %v66
    %v68 = vrot.slane %v63, %v67
    %vm70 = vcmask 130048
    %v72 = vsel %vm70, %v60, 0
    %74 = vmatprep.subr.mxu0 0.0
    %75 = vmatpush1.msra.mxu0 %v61
    %76 = vmatprep.subr.mxu0 0.0
    %77 = vmatpush1.msra.mxu0 %v62
    %78 = vmatprep.subr.mxu0 0.0
    %79 = vmatpush1.msra.mxu0 0.0
    %80 = vmatprep.subr.mxu0 0.0
    %81 = vmatpush1.msra.mxu0 0.0
    %82 = vmatprep.subr.mxu0 0.0
    %83 = vmatpush1.msra.mxu0 0.0
    %84 = vmatprep.subr.mxu0 0.0
    %85 = vmatpush1.msra.mxu0 0.0
    %86 = vmatprep.subr.mxu0 0.0
    %87 = vmatpush1.msra.mxu0 0.0
    %88 = vmatprep.subr.mxu0 0.0
    %89 = vmatpush1.msra.mxu0 0.0
    %90 = vmatprep.subr.mxu0 0.0
    %91 = vmatpush1.msra.mxu0 0.0
    %92 = vmatprep.subr.mxu0 0.0
    %93 = vmatpush1.msra.mxu0 0.0
    %94 = vmatprep.subr.mxu0 0.0
    %95 = vmatpush1.msra.mxu0 0.0
    %96 = vmatprep.subr.mxu0 0.0
    %97 = vmatpush1.msra.mxu0 0.0
    %98 = vmatprep.subr.mxu0 0.0
    %99 = vmatpush1.msra.mxu0 0.0
    %100 = vmatprep.subr.mxu0 0.0
    %101 = vmatpush1.msra.mxu0 0.0
    %102 = vmatprep.subr.mxu0 0.0
    %103 = vmatpush1.msra.mxu0 0.0
    %104 = vmatprep.subr.mxu0 0.0
    %105 = vmatpush1.msra.mxu0 0.0
    %106 = vmatprep.subr.mxu0 0.0
    %107 = vmatpush1.msra.mxu0 0.0
    %108 = vmatprep.subr.mxu0 0.0
    %109 = vmatpush1.msra.mxu0 0.0
    %110 = vmatprep.subr.mxu0 0.0
    %111 = vmatpush1.msra.mxu0 0.0
    %112 = vmatprep.subr.mxu0 0.0
    %113 = vmatpush1.msra.mxu0 0.0
    %114 = vmatprep.subr.mxu0 0.0
    %115 = vmatpush1.msra.mxu0 0.0
    %116 = vmatprep.subr.mxu0 0.0
    %117 = vmatpush1.msra.mxu0 0.0
    %118 = vmatprep.subr.mxu0 0.0
    %119 = vmatpush1.msra.mxu0 0.0
    %120 = vmatprep.subr.mxu0 0.0
    %121 = vmatpush1.msra.mxu0 0.0
    %122 = vmatprep.subr.mxu0 0.0
    %123 = vmatpush1.msra.mxu0 0.0
    %124 = vmatprep.subr.mxu0 0.0
    %125 = vmatpush1.msra.mxu0 0.0
    %126 = vmatprep.subr.mxu0 0.0
    %127 = vmatpush1.msra.mxu0 0.0
    %128 = vmatprep.subr.mxu0 0.0
    %129 = vmatpush1.msra.mxu0 0.0
    %130 = vmatprep.subr.mxu0 0.0
    %131 = vmatpush1.msra.mxu0 0.0
    %132 = vmatprep.subr.mxu0 0.0
    %133 = vmatpush1.msra.mxu0 0.0
    %134 = vmatprep.subr.mxu0 0.0
    %135 = vmatpush1.msra.mxu0 0.0
    %136 = vmatprep.subr.mxu0 0.0
    %137 = vmatpush1.msra.mxu0 0.0
    %138 = vmatprep.mubr.f32.mxu0 0.0
    %139 = vmatmul.mubr.f32.gmra.mrb[0].mxu0 %v72
    %v140 = vpop.f32.mrb[0].mxu0
    %v141 = vadd.f32 %v68, %v140
    %v142 = vpop.f32.mrb[0].mxu0
    %143 = vdwg.mxu0
    %v144 = vmax.f32 %v141, 0.0
    %v145 = vld [vmem:[#allocation7] sm:$0xff]
    %v146 = vld [vmem:[#allocation7 + $0x8] sm:$0xff]
    %v147 = vld [vmem:[#allocation7 + $0x10] sm:$0xff]
    %v148 = vld [vmem:[#allocation7 + $0x18] sm:$0xff]
    %v149 = vld [vmem:[%s4] sm:$0x1]
    %v151 = vlaneseq
    %v152 = vshrl.u32 %v151, 7
    %v153 = vsub.s32 0, %v152
    %v154 = vrot.slane %v149, %v153
    %vm156 = vcmask 261120
    %v158 = vsel %vm156, %v144, 0
    %160 = vmatprep.subr.mxu0 0.0
    %161 = vmatpush1.msra.mxu0 %v145
    %162 = vmatprep.subr.mxu0 0.0
    %163 = vmatpush1.msra.mxu0 %v146
    %164 = vmatprep.subr.mxu0 0.0
    %165 = vmatpush1.msra.mxu0 %v147
    %166 = vmatprep.subr.mxu0 0.0
    %167 = vmatpush1.msra.mxu0 %v148
    %168 = vmatprep.subr.mxu0 0.0
    %169 = vmatpush1.msra.mxu0 0.0
    %170 = vmatprep.subr.mxu0 0.0
    %171 = vmatpush1.msra.mxu0 0.0
    %172 = vmatprep.subr.mxu0 0.0
    %173 = vmatpush1.msra.mxu0 0.0
    %174 = vmatprep.subr.mxu0 0.0
    %175 = vmatpush1.msra.mxu0 0.0
    %176 = vmatprep.subr.mxu0 0.0
    %177 = vmatpush1.msra.mxu0 0.0
    %178 = vmatprep.subr.mxu0 0.0
    %179 = vmatpush1.msra.mxu0 0.0
    %180 = vmatprep.subr.mxu0 0.0
    %181 = vmatpush1.msra.mxu0 0.0
    %182 = vmatprep.subr.mxu0 0.0
    %183 = vmatpush1.msra.mxu0 0.0
    %184 = vmatprep.subr.mxu0 0.0
    %185 = vmatpush1.msra.mxu0 0.0
    %186 = vmatprep.subr.mxu0 0.0
    %187 = vmatpush1.msra.mxu0 0.0
    %188 = vmatprep.subr.mxu0 0.0
    %189 = vmatpush1.msra.mxu0 0.0
    %190 = vmatprep.subr.mxu0 0.0
    %191 = vmatpush1.msra.mxu0 0.0
    %192 = vmatprep.subr.mxu0 0.0
    %193 = vmatpush1.msra.mxu0 0.0
    %194 = vmatprep.subr.mxu0 0.0
    %195 = vmatpush1.msra.mxu0 0.0
    %196 = vmatprep.subr.mxu0 0.0
    %197 = vmatpush1.msra.mxu0 0.0
    %198 = vmatprep.subr.mxu0 0.0
    %199 = vmatpush1.msra.mxu0 0.0
    %200 = vmatprep.subr.mxu0 0.0
    %201 = vmatpush1.msra.mxu0 0.0
    %202 = vmatprep.subr.mxu0 0.0
    %203 = vmatpush1.msra.mxu0 0.0
    %204 = vmatprep.subr.mxu0 0.0
    %205 = vmatpush1.msra.mxu0 0.0
    %206 = vmatprep.subr.mxu0 0.0
    %207 = vmatpush1.msra.mxu0 0.0
    %208 = vmatprep.subr.mxu0 0.0
    %209 = vmatpush1.msra.mxu0 0.0
    %210 = vmatprep.subr.mxu0 0.0
    %211 = vmatpush1.msra.mxu0 0.0
    %212 = vmatprep.subr.mxu0 0.0
    %213 = vmatpush1.msra.mxu0 0.0
    %214 = vmatprep.subr.mxu0 0.0
    %215 = vmatpush1.msra.mxu0 0.0
    %216 = vmatprep.subr.mxu0 0.0
    %217 = vmatpush1.msra.mxu0 0.0
    %218 = vmatprep.subr.mxu0 0.0
    %219 = vmatpush1.msra.mxu0 0.0
    %220 = vmatprep.subr.mxu0 0.0
    %221 = vmatpush1.msra.mxu0 0.0
    %222 = vmatprep.subr.mxu0 0.0
    %223 = vmatpush1.msra.mxu0 0.0
    %224 = vmatprep.mubr.f32.mxu0 0.0
    %225 = vmatmul.mubr.f32.gmra.mrb[0].mxu0 %v158
    %v226 = vpop.f32.mrb[0].mxu0
    %v227 = vadd.f32 %v154, %v226
    %v228 = vpop.f32.mrb[0].mxu0
    %229 = vdwg.mxu0
    %v230 = vlaneseq
    %v231 = vand.u32 %v230, 127
    %vm232 = vcmp.ge.s32.totalorder %v231, 8
    %vm233 = vcmp.lt.s32.totalorder %v231, 16
    %vm234 = vmand %vm232, %vm233
    %v235 = vadd.f32 %v227, 0.2
    %v236 = vxor.u32 %v235, 2147483648
    %v237 = vmul.f32 %v236, 1.442695
    %v238 = vpow.pop %v237
    %v239 = vadd.f32 %v238, 1.0
    %v240 = vrcp.pop %v239
    %v241 = vmul.f32 1.0, %v240
    %v242 = vadd.f32 %v241, 1e-08
    %v243 = vmul.f32 %v242, 0.4
    %v244 = vsel %vm234, %v243, %v227
    %245 = vst [vmem:[#allocation8] sm:$0xff] %v244
    // Predicated region
    $region34: #{tpu_custom_call.1} parent=1 // pred_check
      _
    $region35: #{tpu_custom_call.1} parent=1 // pred_check_branch
      %247 = sbr.rel (0) target = $region37
    $region36: #{tpu_custom_call.1} parent=1 // pred_region
      %s249 = ssub.s32 128, 128
      %250 = vsyncadd [#allocation4], %s249
      %s252 = sshll.u32 [#allocation8], 4
      %s253 = int_to_ptr.vmem [resolvable:$true] %s252
      %255 = dma.vmem_to_hbm [thread:$0]  %s253, 128, %s5, [#allocation4]
    $region37: #{tpu_custom_call.1} parent=1 // pred_fallthru
      _
    // Predicated region
    $region38: #{tpu_custom_call.1} parent=1 // pred_check
      _
    $region39: #{tpu_custom_call.1} parent=1 // pred_check_branch
      %257 = sbr.rel (0) target = $region41
    $region40: #{tpu_custom_call.1} parent=1 // pred_region
      %258 = dma.done [#allocation4], 128
    $region41: #{tpu_custom_call.1} parent=1 // pred_fallthru
      _
    %259 = vsyncpa [#allocation3], 1
    %260 = vsyncpa [#allocation6], 1
    %261 = vsyncpa [#allocation4], 1

</llo_original>
